<compile_context>
chip_gen: v6e
topology: v6e:2x2x1
jax: 0.10.0
libtpu: 0.0.40
codegen_flags: <defaults>
</compile_context>

<pallas_src>
import functools
import math

import jax
import jax.numpy as jnp
from jax.experimental import pallas as pl
from jax.experimental.pallas import tpu as pltpu


_LANES = 128
_MIN_GRID_STEPS = 4  # keep both v7x TensorCores busy and the DMA pipeline overlapped


# ---------------------------------------------------------------------------
# Kernels
# ---------------------------------------------------------------------------
def _ln_folded_kernel(x_ref, w_ref, b_ref, s_ref, o_ref, *, eps, seg_len):
    """LayerNorm with G = C // seg_len logical rows packed per 128-lane vector row.

    x_ref: (block_rows, C); w_ref/b_ref: (1, C) f32 (pre-cast + pre-tiled);
    s_ref: (C, C) f32 block-diagonal ones, S[i, j] = 1 iff i//seg_len == j//seg_len.
    The segmented lane reduction is a matmul against S on the otherwise-idle MXU.

    NOTE: in a ragged tail block the out-of-range rows may hold garbage, so rsqrt can
    see junk variance there; Pallas' masked store discards those rows, so do NOT "fix"
    this with an extra in-kernel mask.
    """
    x = x_ref[...].astype(jnp.float32)
    s = s_ref[...]
    inv_n = jnp.float32(1.0 / seg_len)
    mean = jnp.dot(x, s, preferred_element_type=jnp.float32) * inv_n
    xc = x - mean
    var = jnp.dot(xc * xc, s, preferred_element_type=jnp.float32) * inv_n  # biased, as F.layer_norm
    y = xc * jax.lax.rsqrt(var + eps)
    o_ref[...] = (y * w_ref[...] + b_ref[...]).astype(o_ref.dtype)


def _ln_rowwise_kernel(x_ref, w_ref, b_ref, o_ref, *, eps):
    """One logical row per vector row (used when H >= 128 or H does not divide 128)."""
    x = x_ref[...].astype(jnp.float32)
    mean = jnp.mean(x, axis=-1, keepdims=True)
    xc = x - mean
    var = jnp.mean(xc * xc, axis=-1, keepdims=True)  # biased, as F.layer_norm
    y = xc * jax.lax.rsqrt(var + eps)
    o_ref[...] = (y * w_ref[...] + b_ref[...]).astype(o_ref.dtype)


# ---------------------------------------------------------------------------
# Helpers: segment-sum matrix, block sizing, compiler params
# ---------------------------------------------------------------------------
@functools.lru_cache(maxsize=None)
def _segment_sum_matrix(seg_len, lanes):
    """(lanes, lanes) f32 block-diagonal ones matrix (cached across calls)."""
    idx = jnp.arange(lanes, dtype=jnp.int32)
    return (idx[:, None] // seg_len == idx[None, :] // seg_len).astype(jnp.float32)


def _sublane_multiple(dtype):
    """Sublane tile height for a dtype: 8 (f32), 16 (bf16), 32 (int8/fp8)."""
    return max(8, 32 // jnp.dtype(dtype).itemsize)


def _pick_block_rows(num_rows, row_elems, dtype, target_bytes, min_steps=_MIN_GRID_STEPS):
    """Rows per block: ~target_bytes of (lane-padded) data, dtype-aligned sublanes,
    and at least `min_steps` grid steps whenever blocks stay >= one sublane tile."""
    sub = _sublane_multiple(dtype)
    padded_cols = pl.cdiv(row_elems, _LANES) * _LANES
    row_bytes = jnp.dtype(dtype).itemsize * padded_cols
    t = max(1, target_bytes // row_bytes)
    # Force multiple grid steps (megacore sharding on v7x + DMA/compute overlap) as
    # long as each block still spans at least one full sublane tile.
    cap = num_rows // min_steps
    if cap >= sub:
        t = min(t, cap)
    if t >= num_rows:
        return num_rows                      # single block covering the full dim (legal)
    return max(sub, (t // sub) * sub)        # split blocks: dtype-aligned sublane count


def _compiler_params(block_rows, cols, in_dtype, params_bytes):
    """Derive vmem_limit_bytes from the real double-buffered footprint."""
    padded_cols = pl.cdiv(cols, _LANES) * _LANES
    io_bytes = block_rows * padded_cols * jnp.dtype(in_dtype).itemsize
    f32_bytes = block_rows * padded_cols * 4
    # double-buffered in + out, ~3 f32 temporaries, double-buffered params, margin
    need = 2 * (io_bytes + io_bytes) + 3 * f32_bytes + 2 * params_bytes + (2 << 20)
    try:
        cap = int(pltpu.get_tpu_info().vmem_capacity_bytes)
    except Exception:  # pragma: no cover - info not available on all builds
        cap = 64 << 20                       # v7x-safe (64 MiB per TensorCore)
    cap = max(16 << 20, cap - (8 << 20))
    limit = min(max(32 << 20, int(need)), cap)
    return pltpu.CompilerParams(
        dimension_semantics=("parallel",),   # rows are independent
        vmem_limit_bytes=limit,
    )


# ---------------------------------------------------------------------------
# pallas_call wrappers
# ---------------------------------------------------------------------------
def _layer_norm_folded(x, w32, b32, eps, H, G, rows, orig_shape, block_bytes):
    C = G * H
    R = rows // G
    x2 = x.reshape(R, C)                      # contiguous reshape: free, no HBM copy
    # Tiled/cast params are tiny XLA ops; jit the caller to constant-fold them away.
    w2 = jnp.tile(w32, G).reshape(1, C)
    b2 = jnp.tile(b32, G).reshape(1, C)
    seg = _segment_sum_matrix(H, C)
    block_rows = _pick_block_rows(R, C, x.dtype, block_bytes)
    grid = (pl.cdiv(R, block_rows),)
    params_bytes = (2 * C + C * C) * 4
    kernel = functools.partial(_ln_folded_kernel, eps=eps, seg_len=H)
    out = pl.pallas_call(
        kernel,
        out_shape=jax.ShapeDtypeStruct((R, C), x.dtype),
        grid=grid,
        in_specs=[
            pl.BlockSpec((block_rows, C), lambda i: (i, 0)),
            pl.BlockSpec((1, C), lambda i: (0, 0)),
            pl.BlockSpec((1, C), lambda i: (0, 0)),
            pl.BlockSpec((C, C), lambda i: (0, 0)),
        ],
        out_specs=pl.BlockSpec((block_rows, C), lambda i: (i, 0)),
        compiler_params=_compiler_params(block_rows, C, x.dtype, params_bytes),
    )(x2, w2, b2, seg)
    return out.reshape(orig_shape)


def _layer_norm_rowwise(x, w32, b32, eps, H, rows, orig_shape, block_bytes):
    x2 = x.reshape(rows, H)
    w2 = w32.reshape(1, H)
    b2 = b32.reshape(1, H)
    block_rows = _pick_block_rows(rows, H, x.dtype, block_bytes)
    grid = (pl.cdiv(rows, block_rows),)
    params_bytes = 2 * H * 4
    kernel = functools.partial(_ln_rowwise_kernel, eps=eps)
    out = pl.pallas_call(
        kernel,
        out_shape=jax.ShapeDtypeStruct((rows, H), x.dtype),
        grid=grid,
        in_specs=[
            pl.BlockSpec((block_rows, H), lambda i: (i, 0)),
            pl.BlockSpec((1, H), lambda i: (0, 0)),
            pl.BlockSpec((1, H), lambda i: (0, 0)),
        ],
        out_specs=pl.BlockSpec((block_rows, H), lambda i: (i, 0)),
        compiler_params=_compiler_params(block_rows, H, x.dtype, params_bytes),
    )(x2, w2, b2)
    return out.reshape(orig_shape)


def layer_norm(x, weight, bias, eps=1e-5, block_bytes=4 * 1024 * 1024):
    """LayerNorm over the last dimension of x (normalized_shape = (x.shape[-1],))."""
    orig_shape = x.shape
    H = int(orig_shape[-1])
    rows = math.prod(orig_shape[:-1]) if len(orig_shape) > 1 else 1
    w32 = jnp.asarray(weight, jnp.float32).reshape(-1)
    b32 = jnp.asarray(bias, jnp.float32).reshape(-1)

    # Lane-dense path: pack G = 128 // H logical rows into each 128-lane vector row and
    # do the segmented reduction as a matmul on the MXU.
    G = 128 // H if (0 < H < _LANES and _LANES % H == 0) else 1
    if G > 1 and rows % G == 0:
        return _layer_norm_folded(x, w32, b32, eps, H, G, rows, orig_shape, block_bytes)
    # TODO(synk): rows % G != 0 with H < 128 still takes the lane-wasteful row-wise path.
    return _layer_norm_rowwise(x, w32, b32, eps, H, rows, orig_shape, block_bytes)


def layer_norm_reference(x, weight, bias, eps=1e-5):
    xf = x.astype(jnp.float32)
    mean = jnp.mean(xf, axis=-1, keepdims=True)
    var = jnp.mean((xf - mean) ** 2, axis=-1, keepdims=True)
    y = (xf - mean) / jnp.sqrt(var + eps)
    y = y * weight.astype(jnp.float32) + bias.astype(jnp.float32)
    return y.astype(x.dtype)


if __name__ == "__main__":
    # Module config: normalized_shape = hidden = 32, eps = 1e-5, elementwise_affine=True.
    batch, seq, hidden = 2, 16, 32
    key = jax.random.PRNGKey(0)
    k1, k2, k3 = jax.random.split(key, 3)
    x = jax.random.normal(k1, (batch, seq, hidden), dtype=jnp.float32)

    # reset_parameters(): weight = ones, bias = zeros (deterministic init).
    weight = jnp.ones((hidden,), dtype=jnp.float32)
    bias = jnp.zeros((hidden,), dtype=jnp.float32)

    out = jax.block_until_ready(layer_norm(x, weight, bias, eps=1e-5))
    ref = layer_norm_reference(x, weight, bias, eps=1e-5)
    assert out.shape == x.shape and out.dtype == x.dtype
    assert jnp.allclose(out, ref, atol=1e-5, rtol=1e-5), "mismatch vs reference (folded)"

    # Non-trivial affine parameters on the lane-dense (folded / MXU) path.
    w_rnd = jax.random.normal(k2, (hidden,), dtype=jnp.float32) * 0.5 + 1.0
    b_rnd = jax.random.normal(k3, (hidden,), dtype=jnp.float32)
    out2 = jax.block_until_ready(layer_norm(x, w_rnd, b_rnd, eps=1e-5))
    ref2 = layer_norm_reference(x, w_rnd, b_rnd, eps=1e-5)
    assert jnp.allclose(out2, ref2, atol=1e-5, rtol=1e-5), "mismatch vs reference (affine)"

    # Row-wise (already lane-dense) path: hidden = 128.
    x3 = jax.random.normal(jax.random.PRNGKey(1), (2, 8, 128), dtype=jnp.float32)
    w3 = jnp.ones((128,), dtype=jnp.float32)
    b3 = jnp.zeros((128,), dtype=jnp.float32)
    out3 = jax.block_until_ready(layer_norm(x3, w3, b3, eps=1e-5))
    ref3 = layer_norm_reference(x3, w3, b3, eps=1e-5)
    assert jnp.allclose(out3, ref3, atol=1e-5, rtol=1e-5), "mismatch vs reference (rowwise)"

    print("KERNEL_OK")
</pallas_src>

<mosaic_0001>
module attributes {stable_mosaic.version = 11 : i64} {
  func.func @_ln_folded_kernel(%arg0: i32, %arg1: memref<8x128xf32, #tpu.memory_space<vmem>>, %arg2: memref<1x128xf32, #tpu.memory_space<vmem>>, %arg3: memref<1x128xf32, #tpu.memory_space<vmem>>, %arg4: memref<128x128xf32, #tpu.memory_space<vmem>>, %arg5: memref<8x128xf32, #tpu.memory_space<vmem>>) attributes {dimension_semantics = [#tpu.dimension_semantics<parallel>], iteration_bounds = array<i64: 1>, scalar_prefetch = 0 : i64, scratch_operands = 0 : i64, tpu.core_type = #tpu.core_type<tc>, window_params = [{transform_indices = @transform_0, window_bounds = array<i64: 8, 128>}, {pipeline_mode = #tpu.pipeline_mode<synchronous>, transform_indices = @transform_1, window_bounds = array<i64: 1, 128>}, {pipeline_mode = #tpu.pipeline_mode<synchronous>, transform_indices = @transform_2, window_bounds = array<i64: 1, 128>}, {pipeline_mode = #tpu.pipeline_mode<synchronous>, transform_indices = @transform_3, window_bounds = array<i64: 128, 128>}, {transform_indices = @transform_4, window_bounds = array<i64: 8, 128>}]} {
    %c0 = arith.constant 0 : index
    %c0_0 = arith.constant 0 : index
    %0 = vector.load %arg1[%c0, %c0_0] : memref<8x128xf32, #tpu.memory_space<vmem>>, vector<8x128xf32>
    %c0_1 = arith.constant 0 : index
    %c0_2 = arith.constant 0 : index
    %1 = vector.load %arg4[%c0_1, %c0_2] : memref<128x128xf32, #tpu.memory_space<vmem>>, vector<128x128xf32>
    %cst = arith.constant dense<0.000000e+00> : vector<8x128xf32>
    %2 = tpu.matmul %0, %1, %cst {dimension_numbers = #tpu.dot_dimension_numbers<[1], [0], [0], [1], [0, 0, 1, 1], [], []>} : vector<8x128xf32>, vector<128x128xf32>, vector<8x128xf32> -> vector<8x128xf32>
    %cst_3 = arith.constant 3.125000e-02 : f32
    %3 = vector.broadcast %cst_3 : f32 to vector<8x128xf32>
    %4 = arith.mulf %2, %3 : vector<8x128xf32>
    %5 = arith.subf %0, %4 : vector<8x128xf32>
    %6 = arith.mulf %5, %5 : vector<8x128xf32>
    %cst_4 = arith.constant dense<0.000000e+00> : vector<8x128xf32>
    %7 = tpu.matmul %6, %1, %cst_4 {dimension_numbers = #tpu.dot_dimension_numbers<[1], [0], [0], [1], [0, 0, 1, 1], [], []>} : vector<8x128xf32>, vector<128x128xf32>, vector<8x128xf32> -> vector<8x128xf32>
    %cst_5 = arith.constant 3.125000e-02 : f32
    %8 = vector.broadcast %cst_5 : f32 to vector<8x128xf32>
    %9 = arith.mulf %7, %8 : vector<8x128xf32>
    %cst_6 = arith.constant 9.99999974E-6 : f32
    %10 = vector.broadcast %cst_6 : f32 to vector<8x128xf32>
    %11 = arith.addf %9, %10 : vector<8x128xf32>
    %12 = math.rsqrt %11 : vector<8x128xf32>
    %13 = arith.mulf %5, %12 : vector<8x128xf32>
    %c0_7 = arith.constant 0 : index
    %c0_8 = arith.constant 0 : index
    %14 = vector.load %arg2[%c0_7, %c0_8] : memref<1x128xf32, #tpu.memory_space<vmem>>, vector<1x128xf32>
    %15 = vector.broadcast %14 : vector<1x128xf32> to vector<8x128xf32>
    %16 = arith.mulf %13, %15 : vector<8x128xf32>
    %c0_9 = arith.constant 0 : index
    %c0_10 = arith.constant 0 : index
    %17 = vector.load %arg3[%c0_9, %c0_10] : memref<1x128xf32, #tpu.memory_space<vmem>>, vector<1x128xf32>
    %18 = vector.broadcast %17 : vector<1x128xf32> to vector<8x128xf32>
    %19 = arith.addf %16, %18 : vector<8x128xf32>
    %c0_11 = arith.constant 0 : index
    %c0_12 = arith.constant 0 : index
    %20 = vector.load %arg5[%c0_11, %c0_12] : memref<8x128xf32, #tpu.memory_space<vmem>>, vector<8x128xf32>
    tpu.vector_store %arg5[%c0_11, %c0_12], %19 {strides = array<i32>} : memref<8x128xf32, #tpu.memory_space<vmem>>, vector<8x128xf32>,
    return
  }
  func.func @transform_0(%arg0: i32) -> (i32, i32) {
    %c0_i32 = arith.constant 0 : i32
    %c0_i32_0 = arith.constant 0 : i32
    return %arg0, %c0_i32 : i32, i32
  }
  func.func @transform_1(%arg0: i32) -> (i32, i32) {
    %c0_i32 = arith.constant 0 : i32
    %c0_i32_0 = arith.constant 0 : i32
    %c0_i32_1 = arith.constant 0 : i32
    return %c0_i32, %c0_i32_0 : i32, i32
  }
  func.func @transform_2(%arg0: i32) -> (i32, i32) {
    %c0_i32 = arith.constant 0 : i32
    %c0_i32_0 = arith.constant 0 : i32
    %c0_i32_1 = arith.constant 0 : i32
    return %c0_i32, %c0_i32_0 : i32, i32
  }
  func.func @transform_3(%arg0: i32) -> (i32, i32) {
    %c0_i32 = arith.constant 0 : i32
    %c0_i32_0 = arith.constant 0 : i32
    %c0_i32_1 = arith.constant 0 : i32
    return %c0_i32, %c0_i32_0 : i32, i32
  }
  func.func @transform_4(%arg0: i32) -> (i32, i32) {
    %c0_i32 = arith.constant 0 : i32
    %c0_i32_0 = arith.constant 0 : i32
    return %arg0, %c0_i32 : i32, i32
  }
}

</mosaic_0001>

<llo_original>
// kernel: tpu_custom_call.1
$region0: #{tpu_custom_call.1}
  #allocation0 [shape = 'u32[]', space=smem, size = 0x4, offset = 0x4, fixed_abs, tag = 'smem constant byte address 0x4 - core index']
  #allocation1 [shape = 'u32[144,128]{1,0:T(1,128)}', space=vmem, size = 0x12000, scoped, tag = 'internal scratch']
  %s0 = inlined_call_operand.hbm [shape: f32[8,128], index: 0, kind: input, shape index: {}]
  %s1 = inlined_call_operand.vmem [shape: f32[1,128], index: 1, kind: input, shape index: {}]
  %s2 = inlined_call_operand.vmem [shape: f32[1,128], index: 2, kind: input, shape index: {}]
  %s3 = inlined_call_operand.hbm [shape: f32[128,128], index: 3, kind: input, shape index: {}]
  %s4 = inlined_call_operand.hbm [shape: f32[8,128], index: 4, kind: output, shape index: {}]
  %s5 = sld [smem:[#allocation0]]
  $region34: #{tpu_custom_call.1} parent=0
    _
  %s7 = ssub.s32 1, %s5
  %s8 = scalar_select 0, %s7, %s5
  $region1: #{tpu_custom_call.1} parent=0
    #allocation2 [shape = 'u8[4096]{0}', space=vmem, size = 0x1000, scoped, tag = 'input window, operand 0, single buffered']
    #allocation3 [shape = 's32[1]{0}', space=sflag, size = 0x4, scoped, tag = 'scoped memory for tpu_custom_call.1']
    #allocation4 [shape = 's32[1]{0}', space=sflag, size = 0x4, scoped, tag = 'scoped memory for tpu_custom_call.1']
    #allocation5 [shape = 'u8[65536]{0}', space=vmem, size = 0x10000, scoped, tag = 'input window, operand 3, single buffered']
    #allocation6 [shape = 's32[1]{0}', space=sflag, size = 0x4, scoped, tag = 'scoped memory for tpu_custom_call.1']
    #allocation7 [shape = 'u8[4096]{0}', space=vmem, size = 0x1000, scoped, tag = 'output window, operand 0, single buffered']
    %9 = vsyncpa [#allocation3], 0
    %10 = vsyncpa [#allocation6], 0
    %11 = vsyncpa [#allocation4], 0
    // Predicated region
    $region2: #{tpu_custom_call.1} parent=1 // pred_check
      _
    $region3: #{tpu_custom_call.1} parent=1 // pred_check_branch
      %13 = sbr.rel (0) target = $region5
    $region4: #{tpu_custom_call.1} parent=1 // pred_region
      %s15 = ssub.s32 128, 128
      %16 = vsyncadd [#allocation3], %s15
      %s18 = sshll.u32 [#allocation2], 4
      %s19 = int_to_ptr.vmem [resolvable:$true] %s18
      %21 = dma.hbm_to_vmem [thread:$0]  %s0, 128, %s19, [#allocation3]
    $region5: #{tpu_custom_call.1} parent=1 // pred_fallthru
      _
    // Predicated region
    $region6: #{tpu_custom_call.1} parent=1 // pred_check
      _
    $region7: #{tpu_custom_call.1} parent=1 // pred_check_branch
      %23 = sbr.rel (0) target = $region9
    $region8: #{tpu_custom_call.1} parent=1 // pred_region
      _
    $region9: #{tpu_custom_call.1} parent=1 // pred_fallthru
      _
    // Predicated region
    $region10: #{tpu_custom_call.1} parent=1 // pred_check
      _
    $region11: #{tpu_custom_call.1} parent=1 // pred_check_branch
      %25 = sbr.rel (0) target = $region13
    $region12: #{tpu_custom_call.1} parent=1 // pred_region
      _
    $region13: #{tpu_custom_call.1} parent=1 // pred_fallthru
      _
    // Predicated region
    $region14: #{tpu_custom_call.1} parent=1 // pred_check
      _
    $region15: #{tpu_custom_call.1} parent=1 // pred_check_branch
      %27 = sbr.rel (0) target = $region17
    $region16: #{tpu_custom_call.1} parent=1 // pred_region
      %s29 = ssub.s32 2048, 2048
      %30 = vsyncadd [#allocation6], %s29
      %s31 = sshll.u32 [#allocation5], 4
      %s32 = int_to_ptr.vmem [resolvable:$true] %s31
      %37 = dma.hbm_to_vmem [thread:$0]  %s3, 2048, %s32, [#allocation6], 128, 128, 8
    $region17: #{tpu_custom_call.1} parent=1 // pred_fallthru
      _
    // Predicated region
    $region18: #{tpu_custom_call.1} parent=1 // pred_check
      _
    $region19: #{tpu_custom_call.1} parent=1 // pred_check_branch
      %39 = sbr.rel (0) target = $region21
    $region20: #{tpu_custom_call.1} parent=1 // pred_region
      %40 = dma.done [#allocation3], 128
    $region21: #{tpu_custom_call.1} parent=1 // pred_fallthru
      _
    // Predicated region
    $region22: #{tpu_custom_call.1} parent=1 // pred_check
      _
    $region23: #{tpu_custom_call.1} parent=1 // pred_check_branch
      %42 = sbr.rel (0) target = $region25
    $region24: #{tpu_custom_call.1} parent=1 // pred_region
      %43 = dma.done [#allocation6], 2048
    $region25: #{tpu_custom_call.1} parent=1 // pred_fallthru
      _
    %v44 = vld [vmem:[#allocation2] sm:$0xff]
    %v45 = vld [vmem:[#allocation5] sm:$0xff]
    %v46 = vld [vmem:[#allocation5 + $0x8] sm:$0xff]
    %v47 = vld [vmem:[#allocation5 + $0x10] sm:$0xff]
    %v48 = vld [vmem:[#allocation5 + $0x18] sm:$0xff]
    %v49 = vld [vmem:[#allocation5 + $0x20] sm:$0xff]
    %v50 = vld [vmem:[#allocation5 + $0x28] sm:$0xff]
    %v51 = vld [vmem:[#allocation5 + $0x30] sm:$0xff]
    %v52 = vld [vmem:[#allocation5 + $0x38] sm:$0xff]
    %v53 = vld [vmem:[#allocation5 + $0x40] sm:$0xff]
    %v54 = vld [vmem:[#allocation5 + $0x48] sm:$0xff]
    %v55 = vld [vmem:[#allocation5 + $0x50] sm:$0xff]
    %v56 = vld [vmem:[#allocation5 + $0x58] sm:$0xff]
    %v57 = vld [vmem:[#allocation5 + $0x60] sm:$0xff]
    %v58 = vld [vmem:[#allocation5 + $0x68] sm:$0xff]
    %v59 = vld [vmem:[#allocation5 + $0x70] sm:$0xff]
    %v60 = vld [vmem:[#allocation5 + $0x78] sm:$0xff]
    %61 = vmatprep.subr.mxu0 0.0
    %62 = vmatpush1.msra.mxu0 %v60
    %63 = vmatprep.subr.mxu0 0.0
    %64 = vmatpush1.msra.mxu0 %v59
    %65 = vmatprep.subr.mxu0 0.0
    %66 = vmatpush1.msra.mxu0 %v58
    %67 = vmatprep.subr.mxu0 0.0
    %68 = vmatpush1.msra.mxu0 %v57
    %69 = vmatprep.subr.mxu0 0.0
    %70 = vmatpush1.msra.mxu0 %v56
    %71 = vmatprep.subr.mxu0 0.0
    %72 = vmatpush1.msra.mxu0 %v55
    %73 = vmatprep.subr.mxu0 0.0
    %74 = vmatpush1.msra.mxu0 %v54
    %75 = vmatprep.subr.mxu0 0.0
    %76 = vmatpush1.msra.mxu0 %v53
    %77 = vmatprep.subr.mxu0 0.0
    %78 = vmatpush1.msra.mxu0 %v52
    %79 = vmatprep.subr.mxu0 0.0
    %80 = vmatpush1.msra.mxu0 %v51
    %81 = vmatprep.subr.mxu0 0.0
    %82 = vmatpush1.msra.mxu0 %v50
    %83 = vmatprep.subr.mxu0 0.0
    %84 = vmatpush1.msra.mxu0 %v49
    %85 = vmatprep.subr.mxu0 0.0
    %86 = vmatpush1.msra.mxu0 %v48
    %87 = vmatprep.subr.mxu0 0.0
    %88 = vmatpush1.msra.mxu0 %v47
    %89 = vmatprep.subr.mxu0 0.0
    %90 = vmatpush1.msra.mxu0 %v46
    %91 = vmatprep.subr.mxu0 0.0
    %92 = vmatpush1.msra.mxu0 %v45
    %93 = vmatprep.subr.mxu0 0.0
    %94 = vmatpush2.msra.mxu0 0.0
    %95 = vmatprep.subr.mxu0 0.0
    %96 = vmatpush2.msra.mxu0 0.0
    %97 = vmatprep.subr.mxu0 0.0
    %98 = vmatpush2.msra.mxu0 0.0
    %99 = vmatprep.subr.mxu0 0.0
    %100 = vmatpush2.msra.mxu0 0.0
    %101 = vmatprep.subr.mxu0 0.0
    %102 = vmatpush2.msra.mxu0 0.0
    %103 = vmatprep.subr.mxu0 0.0
    %104 = vmatpush2.msra.mxu0 0.0
    %105 = vmatprep.subr.mxu0 0.0
    %106 = vmatpush2.msra.mxu0 0.0
    %107 = vmatprep.subr.mxu0 0.0
    %108 = vmatpush2.msra.mxu0 0.0
    %109 = vmatprep.subr.mxu0 0.0
    %110 = vmatpush2.msra.mxu0 0.0
    %111 = vmatprep.subr.mxu0 0.0
    %112 = vmatpush2.msra.mxu0 0.0
    %113 = vmatprep.subr.mxu0 0.0
    %114 = vmatpush2.msra.mxu0 0.0
    %115 = vmatprep.subr.mxu0 0.0
    %116 = vmatpush2.msra.mxu0 0.0
    %117 = vmatprep.subr.mxu0 0.0
    %118 = vmatpush2.msra.mxu0 0.0
    %119 = vmatprep.subr.mxu0 0.0
    %120 = vmatpush2.msra.mxu0 0.0
    %121 = vmatprep.subr.mxu0 0.0
    %122 = vmatpush2.msra.mxu0 0.0
    %123 = vmatprep.subr.mxu0 0.0
    %124 = vmatpush2.msra.mxu0 0.0
    %125 = vmatprep.mubr.f32.mxu0 0.0
    %126 = vmatmul.mubr.f32.gmra.mxu0 %v44
    %v127 = vpop.f32.mrf.mxu0
    %v128 = vadd.f32 0.0, %v127
    %v129 = vpop.f32.mrf.mxu0
    %130 = vdwg.mxu0
    %v131 = vmul.f32 %v128, 0.03125
    %v132 = vsub.f32 %v44, %v131
    %v133 = vmul.f32 %v132, %v132
    %134 = vmatprep.subr.mxu0 0.0
    %135 = vmatpush1.msra.mxu0 %v60
    %136 = vmatprep.subr.mxu0 0.0
    %137 = vmatpush1.msra.mxu0 %v59
    %138 = vmatprep.subr.mxu0 0.0
    %139 = vmatpush1.msra.mxu0 %v58
    %140 = vmatprep.subr.mxu0 0.0
    %141 = vmatpush1.msra.mxu0 %v57
    %142 = vmatprep.subr.mxu0 0.0
    %143 = vmatpush1.msra.mxu0 %v56
    %144 = vmatprep.subr.mxu0 0.0
    %145 = vmatpush1.msra.mxu0 %v55
    %146 = vmatprep.subr.mxu0 0.0
    %147 = vmatpush1.msra.mxu0 %v54
    %148 = vmatprep.subr.mxu0 0.0
    %149 = vmatpush1.msra.mxu0 %v53
    %150 = vmatprep.subr.mxu0 0.0
    %151 = vmatpush1.msra.mxu0 %v52
    %152 = vmatprep.subr.mxu0 0.0
    %153 = vmatpush1.msra.mxu0 %v51
    %154 = vmatprep.subr.mxu0 0.0
    %155 = vmatpush1.msra.mxu0 %v50
    %156 = vmatprep.subr.mxu0 0.0
    %157 = vmatpush1.msra.mxu0 %v49
    %158 = vmatprep.subr.mxu0 0.0
    %159 = vmatpush1.msra.mxu0 %v48
    %160 = vmatprep.subr.mxu0 0.0
    %161 = vmatpush1.msra.mxu0 %v47
    %162 = vmatprep.subr.mxu0 0.0
    %163 = vmatpush1.msra.mxu0 %v46
    %164 = vmatprep.subr.mxu0 0.0
    %165 = vmatpush1.msra.mxu0 %v45
    %166 = vmatprep.subr.mxu0 0.0
    %167 = vmatpush2.msra.mxu0 0.0
    %168 = vmatprep.subr.mxu0 0.0
    %169 = vmatpush2.msra.mxu0 0.0
    %170 = vmatprep.subr.mxu0 0.0
    %171 = vmatpush2.msra.mxu0 0.0
    %172 = vmatprep.subr.mxu0 0.0
    %173 = vmatpush2.msra.mxu0 0.0
    %174 = vmatprep.subr.mxu0 0.0
    %175 = vmatpush2.msra.mxu0 0.0
    %176 = vmatprep.subr.mxu0 0.0
    %177 = vmatpush2.msra.mxu0 0.0
    %178 = vmatprep.subr.mxu0 0.0
    %179 = vmatpush2.msra.mxu0 0.0
    %180 = vmatprep.subr.mxu0 0.0
    %181 = vmatpush2.msra.mxu0 0.0
    %182 = vmatprep.subr.mxu0 0.0
    %183 = vmatpush2.msra.mxu0 0.0
    %184 = vmatprep.subr.mxu0 0.0
    %185 = vmatpush2.msra.mxu0 0.0
    %186 = vmatprep.subr.mxu0 0.0
    %187 = vmatpush2.msra.mxu0 0.0
    %188 = vmatprep.subr.mxu0 0.0
    %189 = vmatpush2.msra.mxu0 0.0
    %190 = vmatprep.subr.mxu0 0.0
    %191 = vmatpush2.msra.mxu0 0.0
    %192 = vmatprep.subr.mxu0 0.0
    %193 = vmatpush2.msra.mxu0 0.0
    %194 = vmatprep.subr.mxu0 0.0
    %195 = vmatpush2.msra.mxu0 0.0
    %196 = vmatprep.subr.mxu0 0.0
    %197 = vmatpush2.msra.mxu0 0.0
    %198 = vmatprep.mubr.f32.mxu0 0.0
    %199 = vmatmul.mubr.f32.gmra.mxu0 %v133
    %v200 = vpop.f32.mrf.mxu0
    %v201 = vadd.f32 0.0, %v200
    %v202 = vpop.f32.mrf.mxu0
    %203 = vdwg.mxu0
    %v204 = vmul.f32 %v201, 0.03125
    %v205 = vadd.f32 %v204, 1e-05
    %v206 = vrsqrt.pop %v205
    %v207 = vmul.f32 %v132, %v206
    %v208 = vld [vmem:[%s1] sm:$0x1]
    %v210 = vlaneseq
    %v211 = vshrl.u32 %v210, 7
    %v212 = vsub.s32 0, %v211
    %v213 = vrot.slane %v208, %v212
    %v215 = vmul.f32 %v207, %v213
    %v216 = vld [vmem:[%s2] sm:$0x1]
    %v218 = vlaneseq
    %v219 = vshrl.u32 %v218, 7
    %v220 = vsub.s32 0, %v219
    %v221 = vrot.slane %v216, %v220
    %v223 = vadd.f32 %v215, %v221
    %224 = vst [vmem:[#allocation7] sm:$0xff] %v223
    // Predicated region
    $region26: #{tpu_custom_call.1} parent=1 // pred_check
      _
    $region27: #{tpu_custom_call.1} parent=1 // pred_check_branch
      %226 = sbr.rel (0) target = $region29
    $region28: #{tpu_custom_call.1} parent=1 // pred_region
      %s228 = ssub.s32 128, 128
      %229 = vsyncadd [#allocation4], %s228
      %s231 = sshll.u32 [#allocation7], 4
      %s232 = int_to_ptr.vmem [resolvable:$true] %s231
      %234 = dma.vmem_to_hbm [thread:$0]  %s232, 128, %s4, [#allocation4]
    $region29: #{tpu_custom_call.1} parent=1 // pred_fallthru
      _
    // Predicated region
    $region30: #{tpu_custom_call.1} parent=1 // pred_check
      _
    $region31: #{tpu_custom_call.1} parent=1 // pred_check_branch
      %236 = sbr.rel (0) target = $region33
    $region32: #{tpu_custom_call.1} parent=1 // pred_region
      %237 = dma.done [#allocation4], 128
    $region33: #{tpu_custom_call.1} parent=1 // pred_fallthru
      _
    %238 = vsyncpa [#allocation3], 1
    %239 = vsyncpa [#allocation6], 1
    %240 = vsyncpa [#allocation4], 1

</llo_original>
